<compile_context>
chip_gen: v5e
topology: v5e:2x2
jax: 0.10.0
libtpu: 0.0.40
codegen_flags: <defaults>
</compile_context>

<pallas_src>
import functools

import numpy as np
import jax
import jax.numpy as jnp
from jax.experimental import pallas as pl
from jax.experimental.pallas import tpu as pltpu


def decoder_kernel(x_ref, w1_ref, b1_ref, w2_ref, b2_ref, w3_ref, b3_ref,
                   o_ref):
    # fc1 -> (dropout: identity) -> relu    (f32 accumulate, f32 elementwise)
    h1 = jnp.dot(x_ref[...], w1_ref[...], preferred_element_type=jnp.float32)
    h1 = jnp.maximum(h1 + b1_ref[...], 0.0)

    # fc2 -> (dropout: identity) -> relu
    h2 = jnp.dot(h1.astype(w2_ref.dtype), w2_ref[...],
                 preferred_element_type=jnp.float32)
    h2 = jnp.maximum(h2 + b2_ref[...], 0.0)

    # fc3 (no activation); cast once to the output dtype (f32 or bf16)
    o = jnp.dot(h2.astype(w3_ref.dtype), w3_ref[...],
                preferred_element_type=jnp.float32)
    o_ref[...] = (o + b3_ref[...]).astype(o_ref.dtype)


def _round_up(n, m):
    return ((n + m - 1) // m) * m


def _choose_batch_tiling(B, block_b):
    """Pick (TB, B_pad) with >= 2 grid steps and MXU-friendly tile alignment."""
    b8 = _round_up(max(B, 8), 8)
    # Largest tile that still yields >= 2 grid steps, capped at block_b.
    tb = min(block_b, _round_up(-(-b8 // 2), 8))
    # Keep large tiles a multiple of 256 (v6e/v7x MXU) or 128 (v5e).
    for align in (256, 128):
        if tb >= align:
            tb = (tb // align) * align
            break
    b_pad = _round_up(b8, tb)
    if b_pad // tb < 2:          # guarantee >= 2 pipeline steps (and 2 TCs on v7x)
        b_pad = 2 * tb
    return tb, b_pad


def prepare_decoder_params(params, compute_dtype=jnp.bfloat16):
    """One-time prep: 128-lane pad the H/O dims, cast weights to bf16.

    Returns (padded_params, out_dim). Call once and reuse across forwards so
    the per-call path never re-reads / re-writes the weights in HBM.
    Weights are stored [in, out] so the kernel computes x @ W (== x @ W.T in
    PyTorch convention).
    """
    w1, b1, w2, b2, w3, b3 = params
    E, H = w1.shape
    O = w3.shape[1]
    H_p = _round_up(H, 128)
    O_p = _round_up(O, 128)

    def pad_w(w, shape):
        out = jnp.zeros(shape, compute_dtype)
        return out.at[:w.shape[0], :w.shape[1]].set(w.astype(compute_dtype))

    def pad_b(b, n):
        b = jnp.asarray(b, jnp.float32).reshape(1, -1)
        out = jnp.zeros((1, n), jnp.float32)
        return out.at[:, :b.shape[1]].set(b)

    padded = (pad_w(w1, (E, H_p)), pad_b(b1, H_p),
              pad_w(w2, (H_p, H_p)), pad_b(b2, H_p),
              pad_w(w3, (H_p, O_p)), pad_b(b3, O_p))
    return padded, O


@functools.partial(
    jax.jit,
    static_argnames=("out_dim", "block_b", "out_dtype", "single_buffer_weights"))
def decoder_forward(x, padded_params, *, out_dim, block_b=512,
                    out_dtype=jnp.float32, single_buffer_weights=True):
    """x: [B, encoded_dim]. padded_params: output of prepare_decoder_params.

    Returns Xhat: [B, out_dim] in out_dtype (f32 default, bf16 optional).
    """
    w1_p, b1_p, w2_p, b2_p, w3_p, b3_p = padded_params
    B, E = x.shape
    H_p = w1_p.shape[1]
    O_p = w3_p.shape[1]
    compute_dtype = w1_p.dtype

    TB, B_p = _choose_batch_tiling(B, block_b)
    grid = (B_p // TB,)

    # Only a bf16 cast on the dominant x stream; row-pad only when needed,
    # never lane-pad the (possibly tiny) encoded dim.
    if B_p == B:
        x_in = x.astype(compute_dtype)
    else:
        x_in = jnp.zeros((B_p, E), compute_dtype).at[:B].set(
            x.astype(compute_dtype))

    # Constant (VMEM-resident) operands: single-buffer them when supported.
    const_kwargs = {"pipeline_mode": pl.Buffered(1)} if single_buffer_weights else {}

    def const_spec(shape):
        return pl.BlockSpec(shape, lambda i: (0, 0), **const_kwargs)

    # Explicit VMEM budget: resident weights (x2 to cover double-buffer
    # fallback) + biases + 2x streamed x/out tiles + f32 h1/h2 + headroom.
    out_itemsize = np.dtype(out_dtype).itemsize
    in_itemsize = np.dtype(compute_dtype).itemsize
    weight_bytes = (w1_p.size + w2_p.size + w3_p.size) * in_itemsize
    bias_bytes = (b1_p.size + b2_p.size + b3_p.size) * 4
    tile_bytes = 2 * (TB * E * in_itemsize + TB * O_p * out_itemsize)
    inter_bytes = 2 * TB * H_p * 4
    budget = 2 * weight_bytes + bias_bytes + tile_bytes + inter_bytes + (4 << 20)
    vmem_limit = int(min(max(budget, 32 << 20), 128 << 20))

    flops = 2 * B_p * (E * H_p + H_p * H_p + H_p * O_p)
    bytes_accessed = (B_p * E * in_itemsize + weight_bytes + bias_bytes
                      + B_p * O_p * out_itemsize)
    cost = pl.CostEstimate(flops=flops, transcendentals=0,
                           bytes_accessed=bytes_accessed)

    out_p = pl.pallas_call(
        decoder_kernel,
        out_shape=jax.ShapeDtypeStruct((B_p, O_p), out_dtype),
        grid=grid,
        in_specs=[
            # x tile: streamed / double-buffered over the batch grid
            pl.BlockSpec((TB, E), lambda i: (i, 0)),
            # weights & biases: same block every step -> VMEM-resident
            const_spec((E, H_p)),
            const_spec((1, H_p)),
            const_spec((H_p, H_p)),
            const_spec((1, H_p)),
            const_spec((H_p, O_p)),
            const_spec((1, O_p)),
        ],
        out_specs=pl.BlockSpec((TB, O_p), lambda i: (i, 0)),
        compiler_params=pltpu.CompilerParams(
            dimension_semantics=("parallel",),
            vmem_limit_bytes=vmem_limit,
        ),
        cost_estimate=cost,
    )(x_in, w1_p, b1_p, w2_p, b2_p, w3_p, b3_p)

    # Skip the (non-view) slice entirely when nothing was padded.
    if B_p == B and O_p == out_dim:
        return out_p
    return out_p[:B, :out_dim]


def init_decoder_params(key, input_dim, hidden_dim, encoded_dim):
    """Deterministic init matching PyTorch nn.Linear default
    (uniform(-1/sqrt(fan_in), 1/sqrt(fan_in)))."""
    def linear(k, fan_in, fan_out):
        kw, kb = jax.random.split(k)
        bound = 1.0 / jnp.sqrt(float(fan_in))
        # stored as [in, out] so the kernel uses x @ W (== PyTorch x @ W.T)
        w = jax.random.uniform(kw, (fan_in, fan_out), jnp.float32,
                               -bound, bound)
        b = jax.random.uniform(kb, (1, fan_out), jnp.float32, -bound, bound)
        return w, b

    k1, k2, k3 = jax.random.split(key, 3)
    w1, b1 = linear(k1, encoded_dim, hidden_dim)
    w2, b2 = linear(k2, hidden_dim, hidden_dim)
    w3, b3 = linear(k3, hidden_dim, input_dim)
    return (w1, b1, w2, b2, w3, b3)


if __name__ == "__main__":
    key = jax.random.PRNGKey(0)
    batch, input_dim, hidden_dim, encoded_dim = 8, 64, 32, 16

    k_params, k_x = jax.random.split(key)
    params = init_decoder_params(k_params, input_dim, hidden_dim, encoded_dim)
    x = jax.random.normal(k_x, (batch, encoded_dim), jnp.float32)

    # One-time weight prep (pad + bf16 cast) hoisted out of the forward path.
    padded_params, out_dim = prepare_decoder_params(params)
    padded_params = jax.tree_util.tree_map(jax.block_until_ready, padded_params)

    try:
        xhat = decoder_forward(x, padded_params, out_dim=out_dim)
        xhat = jax.block_until_ready(xhat)
    except Exception:
        # Portability fallback: older JAX without BlockSpec pipeline_mode
        # support falls back to default (double-buffered) constant operands.
        xhat = decoder_forward(x, padded_params, out_dim=out_dim,
                               single_buffer_weights=False)
        xhat = jax.block_until_ready(xhat)

    # Sanity check against the plain-JAX f32 reference (kernel streams bf16
    # operands with f32 accumulation, so use a loose-ish tolerance).
    w1, b1, w2, b2, w3, b3 = params
    h1 = jnp.maximum(x @ w1 + b1, 0.0)
    h2 = jnp.maximum(h1 @ w2 + b2, 0.0)
    ref = h2 @ w3 + b3

    assert xhat.shape == (batch, input_dim)
    assert jnp.allclose(xhat, ref, atol=5e-2, rtol=5e-2), (
        float(jnp.max(jnp.abs(xhat - ref))))

    print("KERNEL_OK")
</pallas_src>

<mosaic_0001>
module attributes {stable_mosaic.version = 11 : i64} {
  func.func @decoder_kernel(%arg0: i32, %arg1: memref<8x16xbf16, #tpu.memory_space<vmem>>, %arg2: memref<16x128xbf16, #tpu.memory_space<vmem>>, %arg3: memref<1x128xf32, #tpu.memory_space<vmem>>, %arg4: memref<128x128xbf16, #tpu.memory_space<vmem>>, %arg5: memref<1x128xf32, #tpu.memory_space<vmem>>, %arg6: memref<128x128xbf16, #tpu.memory_space<vmem>>, %arg7: memref<1x128xf32, #tpu.memory_space<vmem>>, %arg8: memref<8x128xf32, #tpu.memory_space<vmem>>) attributes {dimension_semantics = [#tpu.dimension_semantics<parallel>], iteration_bounds = array<i64: 2>, scalar_prefetch = 0 : i64, scratch_operands = 0 : i64, tpu.core_type = #tpu.core_type<tc>, window_params = [{transform_indices = @transform_0, window_bounds = array<i64: 8, 16>}, {pipeline_mode = #tpu.pipeline_mode<synchronous>, transform_indices = @transform_1, window_bounds = array<i64: 16, 128>}, {pipeline_mode = #tpu.pipeline_mode<synchronous>, transform_indices = @transform_2, window_bounds = array<i64: 1, 128>}, {pipeline_mode = #tpu.pipeline_mode<synchronous>, transform_indices = @transform_3, window_bounds = array<i64: 128, 128>}, {pipeline_mode = #tpu.pipeline_mode<synchronous>, transform_indices = @transform_4, window_bounds = array<i64: 1, 128>}, {pipeline_mode = #tpu.pipeline_mode<synchronous>, transform_indices = @transform_5, window_bounds = array<i64: 128, 128>}, {pipeline_mode = #tpu.pipeline_mode<synchronous>, transform_indices = @transform_6, window_bounds = array<i64: 1, 128>}, {transform_indices = @transform_7, window_bounds = array<i64: 8, 128>}]} {
    %c0 = arith.constant 0 : index
    %c0_0 = arith.constant 0 : index
    %0 = vector.load %arg1[%c0, %c0_0] : memref<8x16xbf16, #tpu.memory_space<vmem>>, vector<8x16xbf16>
    %c0_1 = arith.constant 0 : index
    %c0_2 = arith.constant 0 : index
    %1 = vector.load %arg2[%c0_1, %c0_2] : memref<16x128xbf16, #tpu.memory_space<vmem>>, vector<16x128xbf16>
    %cst = arith.constant dense<0.000000e+00> : vector<8x128xf32>
    %2 = tpu.matmul %0, %1, %cst {dimension_numbers = #tpu.dot_dimension_numbers<[1], [0], [0], [1], [0, 0, 1, 1], [], []>} : vector<8x16xbf16>, vector<16x128xbf16>, vector<8x128xf32> -> vector<8x128xf32>
    %c0_3 = arith.constant 0 : index
    %c0_4 = arith.constant 0 : index
    %3 = vector.load %arg3[%c0_3, %c0_4] : memref<1x128xf32, #tpu.memory_space<vmem>>, vector<1x128xf32>
    %4 = vector.broadcast %3 : vector<1x128xf32> to vector<8x128xf32>
    %5 = arith.addf %2, %4 : vector<8x128xf32>
    %cst_5 = arith.constant 0.000000e+00 : f32
    %6 = vector.broadcast %cst_5 : f32 to vector<8x128xf32>
    %7 = arith.maximumf %5, %6 : vector<8x128xf32>
    %8 = arith.truncf %7 : vector<8x128xf32> to vector<8x128xbf16>
    %c0_6 = arith.constant 0 : index
    %c0_7 = arith.constant 0 : index
    %9 = vector.load %arg4[%c0_6, %c0_7] : memref<128x128xbf16, #tpu.memory_space<vmem>>, vector<128x128xbf16>
    %cst_8 = arith.constant dense<0.000000e+00> : vector<8x128xf32>
    %10 = tpu.matmul %8, %9, %cst_8 {dimension_numbers = #tpu.dot_dimension_numbers<[1], [0], [0], [1], [0, 0, 1, 1], [], []>} : vector<8x128xbf16>, vector<128x128xbf16>, vector<8x128xf32> -> vector<8x128xf32>
    %c0_9 = arith.constant 0 : index
    %c0_10 = arith.constant 0 : index
    %11 = vector.load %arg5[%c0_9, %c0_10] : memref<1x128xf32, #tpu.memory_space<vmem>>, vector<1x128xf32>
    %12 = vector.broadcast %11 : vector<1x128xf32> to vector<8x128xf32>
    %13 = arith.addf %10, %12 : vector<8x128xf32>
    %cst_11 = arith.constant 0.000000e+00 : f32
    %14 = vector.broadcast %cst_11 : f32 to vector<8x128xf32>
    %15 = arith.maximumf %13, %14 : vector<8x128xf32>
    %16 = arith.truncf %15 : vector<8x128xf32> to vector<8x128xbf16>
    %c0_12 = arith.constant 0 : index
    %c0_13 = arith.constant 0 : index
    %17 = vector.load %arg6[%c0_12, %c0_13] : memref<128x128xbf16, #tpu.memory_space<vmem>>, vector<128x128xbf16>
    %cst_14 = arith.constant dense<0.000000e+00> : vector<8x128xf32>
    %18 = tpu.matmul %16, %17, %cst_14 {dimension_numbers = #tpu.dot_dimension_numbers<[1], [0], [0], [1], [0, 0, 1, 1], [], []>} : vector<8x128xbf16>, vector<128x128xbf16>, vector<8x128xf32> -> vector<8x128xf32>
    %c0_15 = arith.constant 0 : index
    %c0_16 = arith.constant 0 : index
    %19 = vector.load %arg7[%c0_15, %c0_16] : memref<1x128xf32, #tpu.memory_space<vmem>>, vector<1x128xf32>
    %20 = vector.broadcast %19 : vector<1x128xf32> to vector<8x128xf32>
    %21 = arith.addf %18, %20 : vector<8x128xf32>
    %c0_17 = arith.constant 0 : index
    %c0_18 = arith.constant 0 : index
    %22 = vector.load %arg8[%c0_17, %c0_18] : memref<8x128xf32, #tpu.memory_space<vmem>>, vector<8x128xf32>
    tpu.vector_store %arg8[%c0_17, %c0_18], %21 {strides = array<i32>} : memref<8x128xf32, #tpu.memory_space<vmem>>, vector<8x128xf32>,
    return
  }
  func.func @transform_0(%arg0: i32) -> (i32, i32) {
    %c0_i32 = arith.constant 0 : i32
    %c0_i32_0 = arith.constant 0 : i32
    return %arg0, %c0_i32 : i32, i32
  }
  func.func @transform_1(%arg0: i32) -> (i32, i32) {
    %c0_i32 = arith.constant 0 : i32
    %c0_i32_0 = arith.constant 0 : i32
    %c0_i32_1 = arith.constant 0 : i32
    return %c0_i32, %c0_i32_0 : i32, i32
  }
  func.func @transform_2(%arg0: i32) -> (i32, i32) {
    %c0_i32 = arith.constant 0 : i32
    %c0_i32_0 = arith.constant 0 : i32
    %c0_i32_1 = arith.constant 0 : i32
    return %c0_i32, %c0_i32_0 : i32, i32
  }
  func.func @transform_3(%arg0: i32) -> (i32, i32) {
    %c0_i32 = arith.constant 0 : i32
    %c0_i32_0 = arith.constant 0 : i32
    %c0_i32_1 = arith.constant 0 : i32
    return %c0_i32, %c0_i32_0 : i32, i32
  }
  func.func @transform_4(%arg0: i32) -> (i32, i32) {
    %c0_i32 = arith.constant 0 : i32
    %c0_i32_0 = arith.constant 0 : i32
    %c0_i32_1 = arith.constant 0 : i32
    return %c0_i32, %c0_i32_0 : i32, i32
  }
  func.func @transform_5(%arg0: i32) -> (i32, i32) {
    %c0_i32 = arith.constant 0 : i32
    %c0_i32_0 = arith.constant 0 : i32
    %c0_i32_1 = arith.constant 0 : i32
    return %c0_i32, %c0_i32_0 : i32, i32
  }
  func.func @transform_6(%arg0: i32) -> (i32, i32) {
    %c0_i32 = arith.constant 0 : i32
    %c0_i32_0 = arith.constant 0 : i32
    %c0_i32_1 = arith.constant 0 : i32
    return %c0_i32, %c0_i32_0 : i32, i32
  }
  func.func @transform_7(%arg0: i32) -> (i32, i32) {
    %c0_i32 = arith.constant 0 : i32
    %c0_i32_0 = arith.constant 0 : i32
    return %arg0, %c0_i32 : i32, i32
  }
}

module attributes {stable_mosaic.version = 11 : i64} {
  func.func @decoder_kernel(%arg0: i32, %arg1: memref<8x16xbf16, #tpu.memory_space<vmem>>, %arg2: memref<16x128xbf16, #tpu.memory_space<vmem>>, %arg3: memref<1x128xf32, #tpu.memory_space<vmem>>, %arg4: memref<128x128xbf16, #tpu.memory_space<vmem>>, %arg5: memref<1x128xf32, #tpu.memory_space<vmem>>, %arg6: memref<128x128xbf16, #tpu.memory_space<vmem>>, %arg7: memref<1x128xf32, #tpu.memory_space<vmem>>, %arg8: memref<8x128xf32, #tpu.memory_space<vmem>>) attributes {dimension_semantics = [#tpu.dimension_semantics<parallel>], iteration_bounds = array<i64: 2>, scalar_prefetch = 0 : i64, scratch_operands = 0 : i64, tpu.core_type = #tpu.core_type<tc>, window_params = [{transform_indices = @transform_0, window_bounds = array<i64: 8, 16>}, {pipeline_mode = #tpu.pipeline_mode<synchronous>, transform_indices = @transform_1, window_bounds = array<i64: 16, 128>}, {pipeline_mode = #tpu.pipeline_mode<synchronous>, transform_indices = @transform_2, window_bounds = array<i64: 1, 128>}, {pipeline_mode = #tpu.pipeline_mode<synchronous>, transform_indices = @transform_3, window_bounds = array<i64: 128, 128>}, {pipeline_mode = #tpu.pipeline_mode<synchronous>, transform_indices = @transform_4, window_bounds = array<i64: 1, 128>}, {pipeline_mode = #tpu.pipeline_mode<synchronous>, transform_indices = @transform_5, window_bounds = array<i64: 128, 128>}, {pipeline_mode = #tpu.pipeline_mode<synchronous>, transform_indices = @transform_6, window_bounds = array<i64: 1, 128>}, {transform_indices = @transform_7, window_bounds = array<i64: 8, 128>}]} {
    %c0 = arith.constant 0 : index
    %c0_0 = arith.constant 0 : index
    %0 = vector.load %arg1[%c0, %c0_0] : memref<8x16xbf16, #tpu.memory_space<vmem>>, vector<8x16xbf16>
    %c0_1 = arith.constant 0 : index
    %c0_2 = arith.constant 0 : index
    %1 = vector.load %arg2[%c0_1, %c0_2] : memref<16x128xbf16, #tpu.memory_space<vmem>>, vector<16x128xbf16>
    %cst = arith.constant dense<0.000000e+00> : vector<8x128xf32>
    %2 = tpu.matmul %0, %1, %cst {dimension_numbers = #tpu.dot_dimension_numbers<[1], [0], [0], [1], [0, 0, 1, 1], [], []>} : vector<8x16xbf16>, vector<16x128xbf16>, vector<8x128xf32> -> vector<8x128xf32>
    %c0_3 = arith.constant 0 : index
    %c0_4 = arith.constant 0 : index
    %3 = vector.load %arg3[%c0_3, %c0_4] : memref<1x128xf32, #tpu.memory_space<vmem>>, vector<1x128xf32>
    %4 = vector.broadcast %3 : vector<1x128xf32> to vector<8x128xf32>
    %5 = arith.addf %2, %4 : vector<8x128xf32>
    %cst_5 = arith.constant 0.000000e+00 : f32
    %6 = vector.broadcast %cst_5 : f32 to vector<8x128xf32>
    %7 = arith.maximumf %5, %6 : vector<8x128xf32>
    %8 = arith.truncf %7 : vector<8x128xf32> to vector<8x128xbf16>
    %c0_6 = arith.constant 0 : index
    %c0_7 = arith.constant 0 : index
    %9 = vector.load %arg4[%c0_6, %c0_7] : memref<128x128xbf16, #tpu.memory_space<vmem>>, vector<128x128xbf16>
    %cst_8 = arith.constant dense<0.000000e+00> : vector<8x128xf32>
    %10 = tpu.matmul %8, %9, %cst_8 {dimension_numbers = #tpu.dot_dimension_numbers<[1], [0], [0], [1], [0, 0, 1, 1], [], []>} : vector<8x128xbf16>, vector<128x128xbf16>, vector<8x128xf32> -> vector<8x128xf32>
    %c0_9 = arith.constant 0 : index
    %c0_10 = arith.constant 0 : index
    %11 = vector.load %arg5[%c0_9, %c0_10] : memref<1x128xf32, #tpu.memory_space<vmem>>, vector<1x128xf32>
    %12 = vector.broadcast %11 : vector<1x128xf32> to vector<8x128xf32>
    %13 = arith.addf %10, %12 : vector<8x128xf32>
    %cst_11 = arith.constant 0.000000e+00 : f32
    %14 = vector.broadcast %cst_11 : f32 to vector<8x128xf32>
    %15 = arith.maximumf %13, %14 : vector<8x128xf32>
    %16 = arith.truncf %15 : vector<8x128xf32> to vector<8x128xbf16>
    %c0_12 = arith.constant 0 : index
    %c0_13 = arith.constant 0 : index
    %17 = vector.load %arg6[%c0_12, %c0_13] : memref<128x128xbf16, #tpu.memory_space<vmem>>, vector<128x128xbf16>
    %cst_14 = arith.constant dense<0.000000e+00> : vector<8x128xf32>
    %18 = tpu.matmul %16, %17, %cst_14 {dimension_numbers = #tpu.dot_dimension_numbers<[1], [0], [0], [1], [0, 0, 1, 1], [], []>} : vector<8x128xbf16>, vector<128x128xbf16>, vector<8x128xf32> -> vector<8x128xf32>
    %c0_15 = arith.constant 0 : index
    %c0_16 = arith.constant 0 : index
    %19 = vector.load %arg7[%c0_15, %c0_16] : memref<1x128xf32, #tpu.memory_space<vmem>>, vector<1x128xf32>
    %20 = vector.broadcast %19 : vector<1x128xf32> to vector<8x128xf32>
    %21 = arith.addf %18, %20 : vector<8x128xf32>
    %c0_17 = arith.constant 0 : index
    %c0_18 = arith.constant 0 : index
    %22 = vector.load %arg8[%c0_17, %c0_18] : memref<8x128xf32, #tpu.memory_space<vmem>>, vector<8x128xf32>
    tpu.vector_store %arg8[%c0_17, %c0_18], %21 {strides = array<i32>} : memref<8x128xf32, #tpu.memory_space<vmem>>, vector<8x128xf32>,
    return
  }
  func.func @transform_0(%arg0: i32) -> (i32, i32) {
    %c0_i32 = arith.constant 0 : i32
    %c0_i32_0 = arith.constant 0 : i32
    return %arg0, %c0_i32 : i32, i32
  }
  func.func @transform_1(%arg0: i32) -> (i32, i32) {
    %c0_i32 = arith.constant 0 : i32
    %c0_i32_0 = arith.constant 0 : i32
    %c0_i32_1 = arith.constant 0 : i32
    return %c0_i32, %c0_i32_0 : i32, i32
  }
  func.func @transform_2(%arg0: i32) -> (i32, i32) {
    %c0_i32 = arith.constant 0 : i32
    %c0_i32_0 = arith.constant 0 : i32
    %c0_i32_1 = arith.constant 0 : i32
    return %c0_i32, %c0_i32_0 : i32, i32
  }
  func.func @transform_3(%arg0: i32) -> (i32, i32) {
    %c0_i32 = arith.constant 0 : i32
    %c0_i32_0 = arith.constant 0 : i32
    %c0_i32_1 = arith.constant 0 : i32
    return %c0_i32, %c0_i32_0 : i32, i32
  }
  func.func @transform_4(%arg0: i32) -> (i32, i32) {
    %c0_i32 = arith.constant 0 : i32
    %c0_i32_0 = arith.constant 0 : i32
    %c0_i32_1 = arith.constant 0 : i32
    return %c0_i32, %c0_i32_0 : i32, i32
  }
  func.func @transform_5(%arg0: i32) -> (i32, i32) {
    %c0_i32 = arith.constant 0 : i32
    %c0_i32_0 = arith.constant 0 : i32
    %c0_i32_1 = arith.constant 0 : i32
    return %c0_i32, %c0_i32_0 : i32, i32
  }
  func.func @transform_6(%arg0: i32) -> (i32, i32) {
    %c0_i32 = arith.constant 0 : i32
    %c0_i32_0 = arith.constant 0 : i32
    %c0_i32_1 = arith.constant 0 : i32
    return %c0_i32, %c0_i32_0 : i32, i32
  }
  func.func @transform_7(%arg0: i32) -> (i32, i32) {
    %c0_i32 = arith.constant 0 : i32
    %c0_i32_0 = arith.constant 0 : i32
    return %arg0, %c0_i32 : i32, i32
  }
}

</mosaic_0001>

<llo_original>
// kernel: decoder_forward.1
$region0: #{decoder_forward.1}
  #allocation0 [shape = 'u32[]', space=smem, size = 0x4, offset = 0x4, fixed_abs, tag = 'smem constant byte address 0x4 - core index']
  #allocation1 [shape = 'u32[72,128]{1,0:T(1,128)}', space=vmem, size = 0x9000, scoped, tag = 'internal scratch']
  %s0 = inlined_call_operand.vmem [shape: bf16[16,16], index: 0, kind: input, shape index: {}]
  %s1 = inlined_call_operand.vmem [shape: bf16[16,128], index: 1, kind: input, shape index: {}]
  %s2 = inlined_call_operand.vmem [shape: f32[1,128], index: 2, kind: input, shape index: {}]
  %s3 = inlined_call_operand.hbm [shape: bf16[128,128], index: 3, kind: input, shape index: {}]
  %s4 = inlined_call_operand.vmem [shape: f32[1,128], index: 4, kind: input, shape index: {}]
  %s5 = inlined_call_operand.hbm [shape: bf16[128,128], index: 5, kind: input, shape index: {}]
  %s6 = inlined_call_operand.vmem [shape: f32[1,128], index: 6, kind: input, shape index: {}]
  %s7 = inlined_call_operand.vmem [shape: f32[16,128], index: 7, kind: output, shape index: {}]
  %s8 = sld [smem:[#allocation0]]
  $region69: #{decoder_forward.1} parent=0
    _
  %s10 = ssub.s32 1, %s8
  %s11 = scalar_select 0, %s10, %s8
  $region1: #{decoder_forward.1} parent=0
    #allocation2 [shape = 'u8[32768]{0}', space=vmem, size = 0x8000, scoped, tag = 'input window, operand 3, single buffered']
    #allocation3 [shape = 's32[2]{0}', space=sflag, size = 0x8, scoped, tag = 'scoped memory for decoder_forward.1']
    #allocation4 [shape = 'u8[32768]{0}', space=vmem, size = 0x8000, scoped, tag = 'input window, operand 5, single buffered']
    #allocation5 [shape = 's32[1]{0}', space=sflag, size = 0x4, scoped, tag = 'scoped memory for decoder_forward.1']
    %12 = vsyncpa [#allocation3], 0
    %13 = vsyncpa [#allocation5], 0
    loop: start=0, step=1, limit=4
    $region2: #{decoder_forward.1} parent=1 // loop_pre_header
      _
    $region3: #{decoder_forward.1} parent=1 // loop_header
      %s15 = sphi 0, %s19
      %p16 = scmp.ge.s32.totalorder %s15, 4
      %s25 = sphi 0, %s27
      %s28 = sphi 0, %s25
      %s29 = sphi 0, %s28
      %s45 = sphi 0, %s29
      %s49 = sphi 0, %s49
      %s51 = sphi 0, %s49
      %s52 = sphi 0, %s51
      %s66 = sphi 0, %s52
      %s70 = sphi 0, %s70
      %s72 = sphi 0, %s70
      %s73 = sphi 0, %s72
      %s87 = sphi 0, %s73
      %s91 = sphi 0, %s91
      %s93 = sphi 0, %s91
      %s94 = sphi 0, %s93
      %s108 = sphi 0, %s94
      %s112 = sphi 0, %s112
      %s114 = sphi 0, %s112
      %s115 = sphi 0, %s114
      %s129 = sphi 0, %s115
      %s133 = sphi 0, %s133
      %s135 = sphi 0, %s133
      %s136 = sphi 0, %s135
      %s150 = sphi 0, %s136
      %s154 = sphi 0, %s154
      %s156 = sphi 0, %s154
      %s157 = sphi 0, %s156
      %s171 = sphi 0, %s157
      %s177 = sphi 0, %s179
      %s180 = sphi 0, %s177
      %s181 = sphi 0, %s180
      %s197 = sphi 0, %s181
    $region4: #{decoder_forward.1} parent=1 // loop_header_branch
      %18 = sbr.rel (%p16) target = $region8
    $region5: #{decoder_forward.1} parent=1 // loop_body
      %s20 = ssub.s32 %s15, 1
      %s21 = ssub.s32 %s15, 2
      %s22 = sadd.s32 %s15, 1
      %s23 = ssub.s32 %s15, %s22
      %p24 = scmp.eq.s32.totalorder %s23, 0
      %s26 = sadd.s32 %s25, 1
      %s27 = scalar_select %p24, %s25, %s26
      %p30 = pneg %p24
      %p31 = scmp.eq.s32.totalorder %s15, 1
      %p32 = por %p30, %p31
      %p33 = scmp.ne.s32.totalorder %s25, %s28
      %p34 = scmp.eq.s32.totalorder %s15, 0
      %p35 = por %p33, %p34
      %p36 = scmp.ne.s32.totalorder %s25, %s28
      %p37 = scmp.eq.s32.totalorder %s20, 1
      %p38 = por %p36, %p37
      %p39 = scmp.ne.s32.totalorder %s28, %s29
      %p40 = scmp.eq.s32.totalorder %s20, 0
      %p41 = por %p39, %p40
      %p42 = scmp.ne.s32.totalorder %s28, %s29
      %p43 = scmp.eq.s32.totalorder %s21, 1
      %p44 = por %p42, %p43
      %p46 = scmp.ne.s32.totalorder %s29, %s45
      %p47 = scmp.eq.s32.totalorder %s21, 0
      %p48 = por %p46, %p47
      %s50 = sadd.s32 %s49, 1
      %p53 = scmp.eq.s32.totalorder %s15, 1
      %p54 = scmp.ne.s32.totalorder %s49, %s51
      %p55 = scmp.eq.s32.totalorder %s15, 0
      %p56 = por %p54, %p55
      %p57 = scmp.ne.s32.totalorder %s49, %s51
      %p58 = scmp.eq.s32.totalorder %s20, 1
      %p59 = por %p57, %p58
      %p60 = scmp.ne.s32.totalorder %s51, %s52
      %p61 = scmp.eq.s32.totalorder %s20, 0
      %p62 = por %p60, %p61
      %p63 = scmp.ne.s32.totalorder %s51, %s52
      %p64 = scmp.eq.s32.totalorder %s21, 1
      %p65 = por %p63, %p64
      %p67 = scmp.ne.s32.totalorder %s52, %s66
      %p68 = scmp.eq.s32.totalorder %s21, 0
      %p69 = por %p67, %p68
      %s71 = sadd.s32 %s70, 1
      %p74 = scmp.eq.s32.totalorder %s15, 1
      %p75 = scmp.ne.s32.totalorder %s70, %s72
      %p76 = scmp.eq.s32.totalorder %s15, 0
      %p77 = por %p75, %p76
      %p78 = scmp.ne.s32.totalorder %s70, %s72
      %p79 = scmp.eq.s32.totalorder %s20, 1
      %p80 = por %p78, %p79
      %p81 = scmp.ne.s32.totalorder %s72, %s73
      %p82 = scmp.eq.s32.totalorder %s20, 0
      %p83 = por %p81, %p82
      %p84 = scmp.ne.s32.totalorder %s72, %s73
      %p85 = scmp.eq.s32.totalorder %s21, 1
      %p86 = por %p84, %p85
      %p88 = scmp.ne.s32.totalorder %s73, %s87
      %p89 = scmp.eq.s32.totalorder %s21, 0
      %p90 = por %p88, %p89
      %s92 = sadd.s32 %s91, 1
      %p95 = scmp.eq.s32.totalorder %s15, 1
      %p96 = scmp.ne.s32.totalorder %s91, %s93
      %p97 = scmp.eq.s32.totalorder %s15, 0
      %p98 = por %p96, %p97
      %p99 = scmp.ne.s32.totalorder %s91, %s93
      %p100 = scmp.eq.s32.totalorder %s20, 1
      %p101 = por %p99, %p100
      %p102 = scmp.ne.s32.totalorder %s93, %s94
      %p103 = scmp.eq.s32.totalorder %s20, 0
      %p104 = por %p102, %p103
      %p105 = scmp.ne.s32.totalorder %s93, %s94
      %p106 = scmp.eq.s32.totalorder %s21, 1
      %p107 = por %p105, %p106
      %p109 = scmp.ne.s32.totalorder %s94, %s108
      %p110 = scmp.eq.s32.totalorder %s21, 0
      %p111 = por %p109, %p110
      %s113 = sadd.s32 %s112, 1
      %p116 = scmp.eq.s32.totalorder %s15, 1
      %p117 = scmp.ne.s32.totalorder %s112, %s114
      %p118 = scmp.eq.s32.totalorder %s15, 0
      %p119 = por %p117, %p118
      %p120 = scmp.ne.s32.totalorder %s112, %s114
      %p121 = scmp.eq.s32.totalorder %s20, 1
      %p122 = por %p120, %p121
      %p123 = scmp.ne.s32.totalorder %s114, %s115
      %p124 = scmp.eq.s32.totalorder %s20, 0
      %p125 = por %p123, %p124
      %p126 = scmp.ne.s32.totalorder %s114, %s115
      %p127 = scmp.eq.s32.totalorder %s21, 1
      %p128 = por %p126, %p127
      %p130 = scmp.ne.s32.totalorder %s115, %s129
      %p131 = scmp.eq.s32.totalorder %s21, 0
      %p132 = por %p130, %p131
      %s134 = sadd.s32 %s133, 1
      %p137 = scmp.eq.s32.totalorder %s15, 1
      %p138 = scmp.ne.s32.totalorder %s133, %s135
      %p139 = scmp.eq.s32.totalorder %s15, 0
      %p140 = por %p138, %p139
      %p141 = scmp.ne.s32.totalorder %s133, %s135
      %p142 = scmp.eq.s32.totalorder %s20, 1
      %p143 = por %p141, %p142
      %p144 = scmp.ne.s32.totalorder %s135, %s136
      %p145 = scmp.eq.s32.totalorder %s20, 0
      %p146 = por %p144, %p145
      %p147 = scmp.ne.s32.totalorder %s135, %s136
      %p148 = scmp.eq.s32.totalorder %s21, 1
      %p149 = por %p147, %p148
      %p151 = scmp.ne.s32.totalorder %s136, %s150
      %p152 = scmp.eq.s32.totalorder %s21, 0
      %p153 = por %p151, %p152
      %s155 = sadd.s32 %s154, 1
      %p158 = scmp.eq.s32.totalorder %s15, 1
      %p159 = scmp.ne.s32.totalorder %s154, %s156
      %p160 = scmp.eq.s32.totalorder %s15, 0
      %p161 = por %p159, %p160
      %p162 = scmp.ne.s32.totalorder %s154, %s156
      %p163 = scmp.eq.s32.totalorder %s20, 1
      %p164 = por %p162, %p163
      %p165 = scmp.ne.s32.totalorder %s156, %s157
      %p166 = scmp.eq.s32.totalorder %s20, 0
      %p167 = por %p165, %p166
      %p168 = scmp.ne.s32.totalorder %s156, %s157
      %p169 = scmp.eq.s32.totalorder %s21, 1
      %p170 = por %p168, %p169
      %p172 = scmp.ne.s32.totalorder %s157, %s171
      %p173 = scmp.eq.s32.totalorder %s21, 0
      %p174 = por %p172, %p173
      %s175 = ssub.s32 %s15, %s22
      %p176 = scmp.eq.s32.totalorder %s175, 0
      %s178 = sadd.s32 %s177, 1
      %s179 = scalar_select %p176, %s177, %s178
      %p182 = pneg %p176
      %p183 = scmp.eq.s32.totalorder %s15, 1
      %p184 = por %p182, %p183
      %p185 = scmp.ne.s32.totalorder %s177, %s180
      %p186 = scmp.eq.s32.totalorder %s15, 0
      %p187 = por %p185, %p186
      %p188 = scmp.ne.s32.totalorder %s177, %s180
      %p189 = scmp.eq.s32.totalorder %s20, 1
      %p190 = por %p188, %p189
      %p191 = scmp.ne.s32.totalorder %s180, %s181
      %p192 = scmp.eq.s32.totalorder %s20, 0
      %p193 = por %p191, %p192
      %p194 = scmp.ne.s32.totalorder %s180, %s181
      %p195 = scmp.eq.s32.totalorder %s21, 1
      %p196 = por %p194, %p195
      %p198 = scmp.ne.s32.totalorder %s181, %s197
      %p199 = scmp.eq.s32.totalorder %s21, 0
      %p200 = por %p198, %p199
      %p201 = scmp.le.s32.totalorder 1, %s15
      %p202 = scmp.lt.s32.totalorder %s15, 3
      %p203 = pnand %p201, %p202
      %p204 = pneg %p203
      // Predicated region
      $region9: #{decoder_forward.1} parent=5 // pred_check
        _
      $region10: #{decoder_forward.1} parent=5 // pred_check_branch
        %206 = sbr.rel (%p203) target = $region12
      $region11: #{decoder_forward.1} parent=5 // pred_region
        %s207 = ssub.s32 %s15, 1
        // Predicated region
        $region13: #{decoder_forward.1} parent=11 // pred_check
          %p208 = pneg %p62
        $region14: #{decoder_forward.1} parent=11 // pred_check_branch
          %210 = sbr.rel (%p208) target = $region16
        $region15: #{decoder_forward.1} parent=11 // pred_region
          _
        $region16: #{decoder_forward.1} parent=11 // pred_fallthru
          _
        // Predicated region
        $region17: #{decoder_forward.1} parent=11 // pred_check
          %p211 = pneg %p83
        $region18: #{decoder_forward.1} parent=11 // pred_check_branch
          %213 = sbr.rel (%p211) target = $region20
        $region19: #{decoder_forward.1} parent=11 // pred_region
          _
        $region20: #{decoder_forward.1} parent=11 // pred_fallthru
          _
        // Predicated region
        $region21: #{decoder_forward.1} parent=11 // pred_check
          %p214 = pneg %p104
        $region22: #{decoder_forward.1} parent=11 // pred_check_branch
          %216 = sbr.rel (%p214) target = $region24
        $region23: #{decoder_forward.1} parent=11 // pred_region
          %218 = vsyncadd [#allocation3], 0
          %s219 = sshll.u32 %s3, 4
          %s220 = int_to_ptr.hbm [resolvable:$true] %s219
          %s221 = sshll.u32 [#allocation2], 4
          %s222 = int_to_ptr.vmem [resolvable:$true] %s221
          %227 = dma.hbm_to_vmem [thread:$0]  %s220, 1024, %s222, [#allocation3], 64, 64, 4
        $region24: #{decoder_forward.1} parent=11 // pred_fallthru
          _
        // Predicated region
        $region25: #{decoder_forward.1} parent=11 // pred_check
          %p228 = pneg %p125
        $region26: #{decoder_forward.1} parent=11 // pred_check_branch
          %230 = sbr.rel (%p228) target = $region28
        $region27: #{decoder_forward.1} parent=11 // pred_region
          _
        $region28: #{decoder_forward.1} parent=11 // pred_fallthru
          _
        // Predicated region
        $region29: #{decoder_forward.1} parent=11 // pred_check
          %p231 = pneg %p146
        $region30: #{decoder_forward.1} parent=11 // pred_check_branch
          %233 = sbr.rel (%p231) target = $region32
        $region31: #{decoder_forward.1} parent=11 // pred_region
          %235 = vsyncadd [#allocation5], 0
          %s236 = sshll.u32 %s5, 4
          %s237 = int_to_ptr.hbm [resolvable:$true] %s236
          %s238 = sshll.u32 [#allocation4], 4
          %s239 = int_to_ptr.vmem [resolvable:$true] %s238
          %244 = dma.hbm_to_vmem [thread:$0]  %s237, 1024, %s239, [#allocation5], 64, 64, 4
        $region32: #{decoder_forward.1} parent=11 // pred_fallthru
          _
        // Predicated region
        $region33: #{decoder_forward.1} parent=11 // pred_check
          %p245 = pneg %p167
        $region34: #{decoder_forward.1} parent=11 // pred_check_branch
          %247 = sbr.rel (%p245) target = $region36
        $region35: #{decoder_forward.1} parent=11 // pred_region
          _
        $region36: #{decoder_forward.1} parent=11 // pred_fallthru
          _
      $region12: #{decoder_forward.1} parent=5 // pred_fallthru
        _
      %p248 = scmp.lt.s32.totalorder %s15, 2
      // Predicated region
      $region37: #{decoder_forward.1} parent=5 // pred_check
        %p249 = pneg %p248
      $region38: #{decoder_forward.1} parent=5 // pred_check_branch
        %251 = sbr.rel (%p249) target = $region40
      $region39: #{decoder_forward.1} parent=5 // pred_region
        // Predicated region
        $region41: #{decoder_forward.1} parent=39 // pred_check
          %p252 = pneg %p35
        $region42: #{decoder_forward.1} parent=39 // pred_check_branch
          %254 = sbr.rel (%p252) target = $region44
        $region43: #{decoder_forward.1} parent=39 // pred_region
          %p255 = scmp.lt.s32.totalorder %s15, 1
          %s256 = scalar_select %p255, %s15, 1
          %s257 = smul.addr %s256, 4
          %s258 = scalar_lea.vmem %s0, %s257
        $region44: #{decoder_forward.1} parent=39 // pred_fallthru
          _
      $region40: #{decoder_forward.1} parent=5 // pred_fallthru
        _
      %p259 = scmp.le.s32.totalorder 1, %s15
      %p260 = scmp.lt.s32.totalorder %s15, 3
      %p261 = pnand %p259, %p260
      %p262 = pneg %p261
      // Predicated region
      $region45: #{decoder_forward.1} parent=5 // pred_check
        _
      $region46: #{decoder_forward.1} parent=5 // pred_check_branch
        %264 = sbr.rel (%p261) target = $region48
      $region47: #{decoder_forward.1} parent=5 // pred_region
        %s265 = ssub.s32 %s15, 1
        // Predicated region
        $region49: #{decoder_forward.1} parent=47 // pred_check
          %p266 = pneg %p104
        $region50: #{decoder_forward.1} parent=47 // pred_check_branch
          %268 = sbr.rel (%p266) target = $region52
        $region51: #{decoder_forward.1} parent=47 // pred_region
          %270 = dma.done [#allocation3], 1024
        $region52: #{decoder_forward.1} parent=47 // pred_fallthru
          _
        // Predicated region
        $region53: #{decoder_forward.1} parent=47 // pred_check
          %p271 = pneg %p146
        $region54: #{decoder_forward.1} parent=47 // pred_check_branch
          %273 = sbr.rel (%p271) target = $region56
        $region55: #{decoder_forward.1} parent=47 // pred_region
          %275 = dma.done [#allocation5], 1024
        $region56: #{decoder_forward.1} parent=47 // pred_fallthru
          _
        %p276 = scmp.lt.s32.totalorder %s20, 1
        %s277 = scalar_select %p276, %s20, 1
        %s278 = smul.addr %s277, 4
        %s279 = scalar_lea.vmem %s0, %s278
        %p280 = pneg %p41
        %p281 = pneg %p38
        %p282 = pneg %p62
        %p283 = pneg %p59
        %p284 = pneg %p83
        %p285 = pneg %p80
        %p286 = pneg %p104
        %p287 = pneg %p101
        %p288 = pneg %p125
        %p289 = pneg %p122
        %p290 = pneg %p146
        %p291 = pneg %p143
        %p292 = pneg %p167
        %p293 = pneg %p164
        %p294 = pneg %p193
        %p295 = pneg %p190
        %p296 = scmp.lt.s32.totalorder %s20, 1
        %s297 = scalar_select %p296, %s20, 1
        %s298 = smul.addr %s297, 8
        %s299 = scalar_lea.vmem %s7, %s298
        %p300 = scmp.lt.s32.totalorder %s20, 1
        %s301 = scalar_select %p300, %s20, 1
        %s302 = smul.addr %s301, 4
        %s303 = scalar_lea.vmem %s0, %s302
        %p304 = scmp.lt.s32.totalorder %s20, 1
        %s305 = scalar_select %p304, %s20, 1
        %s306 = smul.addr %s305, 8
        %s307 = scalar_lea.vmem %s7, %s306
        %v309 = vld [vmem:[%s303] sm:$0xf]
        %v310 = vld [vmem:[%s1] sm:$0xf]
        %v311 = vld [vmem:[%s1 + $0x4] sm:$0xf]
        %v312 = vld [vmem:[%s2] sm:$0x1]
        %v314 = vperm.slane %v312, 0
        %v318 = vunpack.c.l.b16 %v310
        %v319 = vunpack.c.l.b16 %v311
        %v320 = vpack.c.b16 %v319, %v318
        %vm322 = vcmask 130048
        %v324 = vsel %vm322, %v309, 0
        %326 = vmatpush.bf16.msra.mxu0 0
        %327 = vmatpush.bf16.msra.mxu0 0
        %328 = vmatpush.bf16.msra.mxu0 0
        %329 = vmatpush.bf16.msra.mxu0 0
        %330 = vmatpush.bf16.msra.mxu0 0
        %331 = vmatpush.bf16.msra.mxu0 0
        %332 = vmatpush.bf16.msra.mxu0 0
        %333 = vmatpush.bf16.msra.mxu0 %v320
        %334 = vmatmul.bf16.gmra.mxu0 %v324
        %v335 = vpop.f32.mrf.mxu0
        %v336 = vadd.f32 %v314, %v335
        %v337 = vpop.f32.mrf.mxu0
        %338 = vdwg.mxu0
        %v339 = vmax.f32 %v336, 0.0
        %v340 = vpack.c.bf16 %v339, %v339
        %v341 = vld [vmem:[#allocation2] sm:$0xf]
        %v342 = vld [vmem:[#allocation2 + $0x4] sm:$0xf]
        %v343 = vld [vmem:[#allocation2 + $0x8] sm:$0xf]
        %v344 = vld [vmem:[#allocation2 + $0xc] sm:$0xf]
        %v345 = vld [vmem:[#allocation2 + $0x10] sm:$0xf]
        %v346 = vld [vmem:[#allocation2 + $0x14] sm:$0xf]
        %v347 = vld [vmem:[#allocation2 + $0x18] sm:$0xf]
        %v348 = vld [vmem:[#allocation2 + $0x1c] sm:$0xf]
        %v349 = vld [vmem:[#allocation2 + $0x20] sm:$0xf]
        %v350 = vld [vmem:[#allocation2 + $0x24] sm:$0xf]
        %v351 = vld [vmem:[#allocation2 + $0x28] sm:$0xf]
        %v352 = vld [vmem:[#allocation2 + $0x2c] sm:$0xf]
        %v353 = vld [vmem:[#allocation2 + $0x30] sm:$0xf]
        %v354 = vld [vmem:[#allocation2 + $0x34] sm:$0xf]
        %v355 = vld [vmem:[#allocation2 + $0x38] sm:$0xf]
        %v356 = vld [vmem:[#allocation2 + $0x3c] sm:$0xf]
        %v357 = vld [vmem:[%s4] sm:$0x1]
        %v359 = vperm.slane %v357, 0
        %v377 = vunpack.c.l.b16 %v341
        %v378 = vunpack.c.l.b16 %v342
        %v379 = vunpack.c.l.b16 %v343
        %v380 = vunpack.c.l.b16 %v344
        %v381 = vunpack.c.l.b16 %v345
        %v382 = vunpack.c.l.b16 %v346
        %v383 = vunpack.c.l.b16 %v347
        %v384 = vunpack.c.l.b16 %v348
        %v385 = vunpack.c.l.b16 %v349
        %v386 = vunpack.c.l.b16 %v350
        %v387 = vunpack.c.l.b16 %v351
        %v388 = vunpack.c.l.b16 %v352
        %v389 = vunpack.c.l.b16 %v353
        %v390 = vunpack.c.l.b16 %v354
        %v391 = vunpack.c.l.b16 %v355
        %v392 = vunpack.c.l.b16 %v356
        %v393 = vpack.c.b16 %v378, %v377
        %v394 = vpack.c.b16 %v380, %v379
        %v395 = vpack.c.b16 %v382, %v381
        %v396 = vpack.c.b16 %v384, %v383
        %v397 = vpack.c.b16 %v386, %v385
        %v398 = vpack.c.b16 %v388, %v387
        %v399 = vpack.c.b16 %v390, %v389
        %v400 = vpack.c.b16 %v392, %v391
        %409 = vmatpush.bf16.msra.mxu0 %v400
        %410 = vmatpush.bf16.msra.mxu0 %v399
        %411 = vmatpush.bf16.msra.mxu0 %v398
        %412 = vmatpush.bf16.msra.mxu0 %v397
        %413 = vmatpush.bf16.msra.mxu0 %v396
        %414 = vmatpush.bf16.msra.mxu0 %v395
        %415 = vmatpush.bf16.msra.mxu0 %v394
        %416 = vmatpush.bf16.msra.mxu0 %v393
        %417 = vmatmul.bf16.gmra.mxu0 %v340
        %v418 = vpop.f32.mrf.mxu0
        %v419 = vadd.f32 %v359, %v418
        %v420 = vpop.f32.mrf.mxu0
        %421 = vdwg.mxu0
        %v422 = vmax.f32 %v419, 0.0
        %v423 = vpack.c.bf16 %v422, %v422
        %v424 = vld [vmem:[#allocation4] sm:$0xf]
        %v425 = vld [vmem:[#allocation4 + $0x4] sm:$0xf]
        %v426 = vld [vmem:[#allocation4 + $0x8] sm:$0xf]
        %v427 = vld [vmem:[#allocation4 + $0xc] sm:$0xf]
        %v428 = vld [vmem:[#allocation4 + $0x10] sm:$0xf]
        %v429 = vld [vmem:[#allocation4 + $0x14] sm:$0xf]
        %v430 = vld [vmem:[#allocation4 + $0x18] sm:$0xf]
        %v431 = vld [vmem:[#allocation4 + $0x1c] sm:$0xf]
        %v432 = vld [vmem:[#allocation4 + $0x20] sm:$0xf]
        %v433 = vld [vmem:[#allocation4 + $0x24] sm:$0xf]
        %v434 = vld [vmem:[#allocation4 + $0x28] sm:$0xf]
        %v435 = vld [vmem:[#allocation4 + $0x2c] sm:$0xf]
        %v436 = vld [vmem:[#allocation4 + $0x30] sm:$0xf]
        %v437 = vld [vmem:[#allocation4 + $0x34] sm:$0xf]
        %v438 = vld [vmem:[#allocation4 + $0x38] sm:$0xf]
        %v439 = vld [vmem:[#allocation4 + $0x3c] sm:$0xf]
        %v440 = vld [vmem:[%s6] sm:$0x1]
        %v442 = vperm.slane %v440, 0
        %v460 = vunpack.c.l.b16 %v424
        %v461 = vunpack.c.l.b16 %v425
        %v462 = vunpack.c.l.b16 %v426
        %v463 = vunpack.c.l.b16 %v427
        %v464 = vunpack.c.l.b16 %v428
        %v465 = vunpack.c.l.b16 %v429
        %v466 = vunpack.c.l.b16 %v430
        %v467 = vunpack.c.l.b16 %v431
        %v468 = vunpack.c.l.b16 %v432
        %v469 = vunpack.c.l.b16 %v433
        %v470 = vunpack.c.l.b16 %v434
        %v471 = vunpack.c.l.b16 %v435
        %v472 = vunpack.c.l.b16 %v436
        %v473 = vunpack.c.l.b16 %v437
        %v474 = vunpack.c.l.b16 %v438
        %v475 = vunpack.c.l.b16 %v439
        %v476 = vpack.c.b16 %v461, %v460
        %v477 = vpack.c.b16 %v463, %v462
        %v478 = vpack.c.b16 %v465, %v464
        %v479 = vpack.c.b16 %v467, %v466
        %v480 = vpack.c.b16 %v469, %v468
        %v481 = vpack.c.b16 %v471, %v470
        %v482 = vpack.c.b16 %v473, %v472
        %v483 = vpack.c.b16 %v475, %v474
        %492 = vmatpush.bf16.msra.mxu0 %v483
        %493 = vmatpush.bf16.msra.mxu0 %v482
        %494 = vmatpush.bf16.msra.mxu0 %v481
        %495 = vmatpush.bf16.msra.mxu0 %v480
        %496 = vmatpush.bf16.msra.mxu0 %v479
        %497 = vmatpush.bf16.msra.mxu0 %v478
        %498 = vmatpush.bf16.msra.mxu0 %v477
        %499 = vmatpush.bf16.msra.mxu0 %v476
        %500 = vmatmul.bf16.gmra.mxu0 %v423
        %v501 = vpop.f32.mrf.mxu0
        %v502 = vadd.f32 %v442, %v501
        %v503 = vpop.f32.mrf.mxu0
        %504 = vdwg.mxu0
        %505 = vst [vmem:[%s307] sm:$0xff] %v502
        %p506 = scmp.lt.s32.totalorder %s20, 1
        %s507 = scalar_select %p506, %s20, 1
        %s508 = smul.addr %s507, 8
        %s509 = scalar_lea.vmem %s7, %s508
        // Predicated region
        $region57: #{decoder_forward.1} parent=47 // pred_check
          %p510 = pneg %p190
        $region58: #{decoder_forward.1} parent=47 // pred_check_branch
          %512 = sbr.rel (%p510) target = $region60
        $region59: #{decoder_forward.1} parent=47 // pred_region
          _
        $region60: #{decoder_forward.1} parent=47 // pred_fallthru
          _
      $region48: #{decoder_forward.1} parent=5 // pred_fallthru
        _
      %p513 = scmp.le.s32.totalorder 2, %s15
      // Predicated region
      $region61: #{decoder_forward.1} parent=5 // pred_check
        %p514 = pneg %p513
      $region62: #{decoder_forward.1} parent=5 // pred_check_branch
        %516 = sbr.rel (%p514) target = $region64
      $region63: #{decoder_forward.1} parent=5 // pred_region
        %s517 = ssub.s32 %s15, 2
        // Predicated region
        $region65: #{decoder_forward.1} parent=63 // pred_check
          %p518 = pneg %p196
        $region66: #{decoder_forward.1} parent=63 // pred_check_branch
          %520 = sbr.rel (%p518) target = $region68
        $region67: #{decoder_forward.1} parent=63 // pred_region
          %p521 = scmp.lt.s32.totalorder %s21, 1
          %s522 = scalar_select %p521, %s21, 1
          %s523 = smul.addr %s522, 8
          %s524 = scalar_lea.vmem %s7, %s523
        $region68: #{decoder_forward.1} parent=63 // pred_fallthru
          _
      $region64: #{decoder_forward.1} parent=5 // pred_fallthru
        _
    $region6: #{decoder_forward.1} parent=1 // loop_footer
      %s19 = sadd.s32 1, %s15
    $region7: #{decoder_forward.1} parent=1 // loop_footer_branch
      %14 = sbr.rel target = $region3
    $region8: #{decoder_forward.1} parent=1 // loop_exit
      _
    %525 = vsyncpa [#allocation3], 1
    %s526 = scalar_lea.sflag [#allocation3], 1
    %527 = vsyncpa %s526, 1
    %528 = vsyncpa [#allocation5], 1

// kernel: decoder_forward.1
$region0: #{decoder_forward.1}
  #allocation0 [shape = 'u32[]', space=smem, size = 0x4, offset = 0x4, fixed_abs, tag = 'smem constant byte address 0x4 - core index']
  #allocation1 [shape = 'u32[72,128]{1,0:T(1,128)}', space=vmem, size = 0x9000, scoped, tag = 'internal scratch']
  %s0 = inlined_call_operand.vmem [shape: bf16[16,16], index: 0, kind: input, shape index: {}]
  %s1 = inlined_call_operand.vmem [shape: bf16[16,128], index: 1, kind: input, shape index: {}]
  %s2 = inlined_call_operand.vmem [shape: f32[1,128], index: 2, kind: input, shape index: {}]
  %s3 = inlined_call_operand.hbm [shape: bf16[128,128], index: 3, kind: input, shape index: {}]
  %s4 = inlined_call_operand.vmem [shape: f32[1,128], index: 4, kind: input, shape index: {}]
  %s5 = inlined_call_operand.hbm [shape: bf16[128,128], index: 5, kind: input, shape index: {}]
  %s6 = inlined_call_operand.vmem [shape: f32[1,128], index: 6, kind: input, shape index: {}]
  %s7 = inlined_call_operand.vmem [shape: f32[16,128], index: 7, kind: output, shape index: {}]
  %s8 = sld [smem:[#allocation0]]
  $region69: #{decoder_forward.1} parent=0
    _
  %s10 = ssub.s32 1, %s8
  %s11 = scalar_select 0, %s10, %s8
  $region1: #{decoder_forward.1} parent=0
    #allocation2 [shape = 'u8[32768]{0}', space=vmem, size = 0x8000, scoped, tag = 'input window, operand 3, single buffered']
    #allocation3 [shape = 's32[2]{0}', space=sflag, size = 0x8, scoped, tag = 'scoped memory for decoder_forward.1']
    #allocation4 [shape = 'u8[32768]{0}', space=vmem, size = 0x8000, scoped, tag = 'input window, operand 5, single buffered']
    #allocation5 [shape = 's32[1]{0}', space=sflag, size = 0x4, scoped, tag = 'scoped memory for decoder_forward.1']
    %12 = vsyncpa [#allocation3], 0
    %13 = vsyncpa [#allocation5], 0
    loop: start=0, step=1, limit=4
    $region2: #{decoder_forward.1} parent=1 // loop_pre_header
      _
    $region3: #{decoder_forward.1} parent=1 // loop_header
      %s15 = sphi 0, %s19
      %p16 = scmp.ge.s32.totalorder %s15, 4
      %s25 = sphi 0, %s27
      %s28 = sphi 0, %s25
      %s29 = sphi 0, %s28
      %s45 = sphi 0, %s29
      %s49 = sphi 0, %s49
      %s51 = sphi 0, %s49
      %s52 = sphi 0, %s51
      %s66 = sphi 0, %s52
      %s70 = sphi 0, %s70
      %s72 = sphi 0, %s70
      %s73 = sphi 0, %s72
      %s87 = sphi 0, %s73
      %s91 = sphi 0, %s91
      %s93 = sphi 0, %s91
      %s94 = sphi 0, %s93
      %s108 = sphi 0, %s94
      %s112 = sphi 0, %s112
      %s114 = sphi 0, %s112
      %s115 = sphi 0, %s114
      %s129 = sphi 0, %s115
      %s133 = sphi 0, %s133
      %s135 = sphi 0, %s133
      %s136 = sphi 0, %s135
      %s150 = sphi 0, %s136
      %s154 = sphi 0, %s154
      %s156 = sphi 0, %s154
      %s157 = sphi 0, %s156
      %s171 = sphi 0, %s157
      %s177 = sphi 0, %s179
      %s180 = sphi 0, %s177
      %s181 = sphi 0, %s180
      %s197 = sphi 0, %s181
    $region4: #{decoder_forward.1} parent=1 // loop_header_branch
      %18 = sbr.rel (%p16) target = $region8
    $region5: #{decoder_forward.1} parent=1 // loop_body
      %s20 = ssub.s32 %s15, 1
      %s21 = ssub.s32 %s15, 2
      %s22 = sadd.s32 %s15, 1
      %s23 = ssub.s32 %s15, %s22
      %p24 = scmp.eq.s32.totalorder %s23, 0
      %s26 = sadd.s32 %s25, 1
      %s27 = scalar_select %p24, %s25, %s26
      %p30 = pneg %p24
      %p31 = scmp.eq.s32.totalorder %s15, 1
      %p32 = por %p30, %p31
      %p33 = scmp.ne.s32.totalorder %s25, %s28
      %p34 = scmp.eq.s32.totalorder %s15, 0
      %p35 = por %p33, %p34
      %p36 = scmp.ne.s32.totalorder %s25, %s28
      %p37 = scmp.eq.s32.totalorder %s20, 1
      %p38 = por %p36, %p37
      %p39 = scmp.ne.s32.totalorder %s28, %s29
      %p40 = scmp.eq.s32.totalorder %s20, 0
      %p41 = por %p39, %p40
      %p42 = scmp.ne.s32.totalorder %s28, %s29
      %p43 = scmp.eq.s32.totalorder %s21, 1
      %p44 = por %p42, %p43
      %p46 = scmp.ne.s32.totalorder %s29, %s45
      %p47 = scmp.eq.s32.totalorder %s21, 0
      %p48 = por %p46, %p47
      %s50 = sadd.s32 %s49, 1
      %p53 = scmp.eq.s32.totalorder %s15, 1
      %p54 = scmp.ne.s32.totalorder %s49, %s51
      %p55 = scmp.eq.s32.totalorder %s15, 0
      %p56 = por %p54, %p55
      %p57 = scmp.ne.s32.totalorder %s49, %s51
      %p58 = scmp.eq.s32.totalorder %s20, 1
      %p59 = por %p57, %p58
      %p60 = scmp.ne.s32.totalorder %s51, %s52
      %p61 = scmp.eq.s32.totalorder %s20, 0
      %p62 = por %p60, %p61
      %p63 = scmp.ne.s32.totalorder %s51, %s52
      %p64 = scmp.eq.s32.totalorder %s21, 1
      %p65 = por %p63, %p64
      %p67 = scmp.ne.s32.totalorder %s52, %s66
      %p68 = scmp.eq.s32.totalorder %s21, 0
      %p69 = por %p67, %p68
      %s71 = sadd.s32 %s70, 1
      %p74 = scmp.eq.s32.totalorder %s15, 1
      %p75 = scmp.ne.s32.totalorder %s70, %s72
      %p76 = scmp.eq.s32.totalorder %s15, 0
      %p77 = por %p75, %p76
      %p78 = scmp.ne.s32.totalorder %s70, %s72
      %p79 = scmp.eq.s32.totalorder %s20, 1
      %p80 = por %p78, %p79
      %p81 = scmp.ne.s32.totalorder %s72, %s73
      %p82 = scmp.eq.s32.totalorder %s20, 0
      %p83 = por %p81, %p82
      %p84 = scmp.ne.s32.totalorder %s72, %s73
      %p85 = scmp.eq.s32.totalorder %s21, 1
      %p86 = por %p84, %p85
      %p88 = scmp.ne.s32.totalorder %s73, %s87
      %p89 = scmp.eq.s32.totalorder %s21, 0
      %p90 = por %p88, %p89
      %s92 = sadd.s32 %s91, 1
      %p95 = scmp.eq.s32.totalorder %s15, 1
      %p96 = scmp.ne.s32.totalorder %s91, %s93
      %p97 = scmp.eq.s32.totalorder %s15, 0
      %p98 = por %p96, %p97
      %p99 = scmp.ne.s32.totalorder %s91, %s93
      %p100 = scmp.eq.s32.totalorder %s20, 1
      %p101 = por %p99, %p100
      %p102 = scmp.ne.s32.totalorder %s93, %s94
      %p103 = scmp.eq.s32.totalorder %s20, 0
      %p104 = por %p102, %p103
      %p105 = scmp.ne.s32.totalorder %s93, %s94
      %p106 = scmp.eq.s32.totalorder %s21, 1
      %p107 = por %p105, %p106
      %p109 = scmp.ne.s32.totalorder %s94, %s108
      %p110 = scmp.eq.s32.totalorder %s21, 0
      %p111 = por %p109, %p110
      %s113 = sadd.s32 %s112, 1
      %p116 = scmp.eq.s32.totalorder %s15, 1
      %p117 = scmp.ne.s32.totalorder %s112, %s114
      %p118 = scmp.eq.s32.totalorder %s15, 0
      %p119 = por %p117, %p118
      %p120 = scmp.ne.s32.totalorder %s112, %s114
      %p121 = scmp.eq.s32.totalorder %s20, 1
      %p122 = por %p120, %p121
      %p123 = scmp.ne.s32.totalorder %s114, %s115
      %p124 = scmp.eq.s32.totalorder %s20, 0
      %p125 = por %p123, %p124
      %p126 = scmp.ne.s32.totalorder %s114, %s115
      %p127 = scmp.eq.s32.totalorder %s21, 1
      %p128 = por %p126, %p127
      %p130 = scmp.ne.s32.totalorder %s115, %s129
      %p131 = scmp.eq.s32.totalorder %s21, 0
      %p132 = por %p130, %p131
      %s134 = sadd.s32 %s133, 1
      %p137 = scmp.eq.s32.totalorder %s15, 1
      %p138 = scmp.ne.s32.totalorder %s133, %s135
      %p139 = scmp.eq.s32.totalorder %s15, 0
      %p140 = por %p138, %p139
      %p141 = scmp.ne.s32.totalorder %s133, %s135
      %p142 = scmp.eq.s32.totalorder %s20, 1
      %p143 = por %p141, %p142
      %p144 = scmp.ne.s32.totalorder %s135, %s136
      %p145 = scmp.eq.s32.totalorder %s20, 0
      %p146 = por %p144, %p145
      %p147 = scmp.ne.s32.totalorder %s135, %s136
      %p148 = scmp.eq.s32.totalorder %s21, 1
      %p149 = por %p147, %p148
      %p151 = scmp.ne.s32.totalorder %s136, %s150
      %p152 = scmp.eq.s32.totalorder %s21, 0
      %p153 = por %p151, %p152
      %s155 = sadd.s32 %s154, 1
      %p158 = scmp.eq.s32.totalorder %s15, 1
      %p159 = scmp.ne.s32.totalorder %s154, %s156
      %p160 = scmp.eq.s32.totalorder %s15, 0
      %p161 = por %p159, %p160
      %p162 = scmp.ne.s32.totalorder %s154, %s156
      %p163 = scmp.eq.s32.totalorder %s20, 1
      %p164 = por %p162, %p163
      %p165 = scmp.ne.s32.totalorder %s156, %s157
      %p166 = scmp.eq.s32.totalorder %s20, 0
      %p167 = por %p165, %p166
      %p168 = scmp.ne.s32.totalorder %s156, %s157
      %p169 = scmp.eq.s32.totalorder %s21, 1
      %p170 = por %p168, %p169
      %p172 = scmp.ne.s32.totalorder %s157, %s171
      %p173 = scmp.eq.s32.totalorder %s21, 0
      %p174 = por %p172, %p173
      %s175 = ssub.s32 %s15, %s22
      %p176 = scmp.eq.s32.totalorder %s175, 0
      %s178 = sadd.s32 %s177, 1
      %s179 = scalar_select %p176, %s177, %s178
      %p182 = pneg %p176
      %p183 = scmp.eq.s32.totalorder %s15, 1
      %p184 = por %p182, %p183
      %p185 = scmp.ne.s32.totalorder %s177, %s180
      %p186 = scmp.eq.s32.totalorder %s15, 0
      %p187 = por %p185, %p186
      %p188 = scmp.ne.s32.totalorder %s177, %s180
      %p189 = scmp.eq.s32.totalorder %s20, 1
      %p190 = por %p188, %p189
      %p191 = scmp.ne.s32.totalorder %s180, %s181
      %p192 = scmp.eq.s32.totalorder %s20, 0
      %p193 = por %p191, %p192
      %p194 = scmp.ne.s32.totalorder %s180, %s181
      %p195 = scmp.eq.s32.totalorder %s21, 1
      %p196 = por %p194, %p195
      %p198 = scmp.ne.s32.totalorder %s181, %s197
      %p199 = scmp.eq.s32.totalorder %s21, 0
      %p200 = por %p198, %p199
      %p201 = scmp.le.s32.totalorder 1, %s15
      %p202 = scmp.lt.s32.totalorder %s15, 3
      %p203 = pnand %p201, %p202
      %p204 = pneg %p203
      // Predicated region
      $region9: #{decoder_forward.1} parent=5 // pred_check
        _
      $region10: #{decoder_forward.1} parent=5 // pred_check_branch
        %206 = sbr.rel (%p203) target = $region12
      $region11: #{decoder_forward.1} parent=5 // pred_region
        %s207 = ssub.s32 %s15, 1
        // Predicated region
        $region13: #{decoder_forward.1} parent=11 // pred_check
          %p208 = pneg %p62
        $region14: #{decoder_forward.1} parent=11 // pred_check_branch
          %210 = sbr.rel (%p208) target = $region16
        $region15: #{decoder_forward.1} parent=11 // pred_region
          _
        $region16: #{decoder_forward.1} parent=11 // pred_fallthru
          _
        // Predicated region
        $region17: #{decoder_forward.1} parent=11 // pred_check
          %p211 = pneg %p83
        $region18: #{decoder_forward.1} parent=11 // pred_check_branch
          %213 = sbr.rel (%p211) target = $region20
        $region19: #{decoder_forward.1} parent=11 // pred_region
          _
        $region20: #{decoder_forward.1} parent=11 // pred_fallthru
          _
        // Predicated region
        $region21: #{decoder_forward.1} parent=11 // pred_check
          %p214 = pneg %p104
        $region22: #{decoder_forward.1} parent=11 // pred_check_branch
          %216 = sbr.rel (%p214) target = $region24
        $region23: #{decoder_forward.1} parent=11 // pred_region
          %218 = vsyncadd [#allocation3], 0
          %s219 = sshll.u32 %s3, 4
          %s220 = int_to_ptr.hbm [resolvable:$true] %s219
          %s221 = sshll.u32 [#allocation2], 4
          %s222 = int_to_ptr.vmem [resolvable:$true] %s221
          %227 = dma.hbm_to_vmem [thread:$0]  %s220, 1024, %s222, [#allocation3], 64, 64, 4
        $region24: #{decoder_forward.1} parent=11 // pred_fallthru
          _
        // Predicated region
        $region25: #{decoder_forward.1} parent=11 // pred_check
          %p228 = pneg %p125
        $region26: #{decoder_forward.1} parent=11 // pred_check_branch
          %230 = sbr.rel (%p228) target = $region28
        $region27: #{decoder_forward.1} parent=11 // pred_region
          _
        $region28: #{decoder_forward.1} parent=11 // pred_fallthru
          _
        // Predicated region
        $region29: #{decoder_forward.1} parent=11 // pred_check
          %p231 = pneg %p146
        $region30: #{decoder_forward.1} parent=11 // pred_check_branch
          %233 = sbr.rel (%p231) target = $region32
        $region31: #{decoder_forward.1} parent=11 // pred_region
          %235 = vsyncadd [#allocation5], 0
          %s236 = sshll.u32 %s5, 4
          %s237 = int_to_ptr.hbm [resolvable:$true] %s236
          %s238 = sshll.u32 [#allocation4], 4
          %s239 = int_to_ptr.vmem [resolvable:$true] %s238
          %244 = dma.hbm_to_vmem [thread:$0]  %s237, 1024, %s239, [#allocation5], 64, 64, 4
        $region32: #{decoder_forward.1} parent=11 // pred_fallthru
          _
        // Predicated region
        $region33: #{decoder_forward.1} parent=11 // pred_check
          %p245 = pneg %p167
        $region34: #{decoder_forward.1} parent=11 // pred_check_branch
          %247 = sbr.rel (%p245) target = $region36
        $region35: #{decoder_forward.1} parent=11 // pred_region
          _
        $region36: #{decoder_forward.1} parent=11 // pred_fallthru
          _
      $region12: #{decoder_forward.1} parent=5 // pred_fallthru
        _
      %p248 = scmp.lt.s32.totalorder %s15, 2
      // Predicated region
      $region37: #{decoder_forward.1} parent=5 // pred_check
        %p249 = pneg %p248
      $region38: #{decoder_forward.1} parent=5 // pred_check_branch
        %251 = sbr.rel (%p249) target = $region40
      $region39: #{decoder_forward.1} parent=5 // pred_region
        // Predicated region
        $region41: #{decoder_forward.1} parent=39 // pred_check
          %p252 = pneg %p35
        $region42: #{decoder_forward.1} parent=39 // pred_check_branch
          %254 = sbr.rel (%p252) target = $region44
        $region43: #{decoder_forward.1} parent=39 // pred_region
          %p255 = scmp.lt.s32.totalorder %s15, 1
          %s256 = scalar_select %p255, %s15, 1
          %s257 = smul.addr %s256, 4
          %s258 = scalar_lea.vmem %s0, %s257
        $region44: #{decoder_forward.1} parent=39 // pred_fallthru
          _
      $region40: #{decoder_forward.1} parent=5 // pred_fallthru
        _
      %p259 = scmp.le.s32.totalorder 1, %s15
      %p260 = scmp.lt.s32.totalorder %s15, 3
      %p261 = pnand %p259, %p260
      %p262 = pneg %p261
      // Predicated region
      $region45: #{decoder_forward.1} parent=5 // pred_check
        _
      $region46: #{decoder_forward.1} parent=5 // pred_check_branch
        %264 = sbr.rel (%p261) target = $region48
      $region47: #{decoder_forward.1} parent=5 // pred_region
        %s265 = ssub.s32 %s15, 1
        // Predicated region
        $region49: #{decoder_forward.1} parent=47 // pred_check
          %p266 = pneg %p104
        $region50: #{decoder_forward.1} parent=47 // pred_check_branch
          %268 = sbr.rel (%p266) target = $region52
        $region51: #{decoder_forward.1} parent=47 // pred_region
          %270 = dma.done [#allocation3], 1024
        $region52: #{decoder_forward.1} parent=47 // pred_fallthru
          _
        // Predicated region
        $region53: #{decoder_forward.1} parent=47 // pred_check
          %p271 = pneg %p146
        $region54: #{decoder_forward.1} parent=47 // pred_check_branch
          %273 = sbr.rel (%p271) target = $region56
        $region55: #{decoder_forward.1} parent=47 // pred_region
          %275 = dma.done [#allocation5], 1024
        $region56: #{decoder_forward.1} parent=47 // pred_fallthru
          _
        %p276 = scmp.lt.s32.totalorder %s20, 1
        %s277 = scalar_select %p276, %s20, 1
        %s278 = smul.addr %s277, 4
        %s279 = scalar_lea.vmem %s0, %s278
        %p280 = pneg %p41
        %p281 = pneg %p38
        %p282 = pneg %p62
        %p283 = pneg %p59
        %p284 = pneg %p83
        %p285 = pneg %p80
        %p286 = pneg %p104
        %p287 = pneg %p101
        %p288 = pneg %p125
        %p289 = pneg %p122
        %p290 = pneg %p146
        %p291 = pneg %p143
        %p292 = pneg %p167
        %p293 = pneg %p164
        %p294 = pneg %p193
        %p295 = pneg %p190
        %p296 = scmp.lt.s32.totalorder %s20, 1
        %s297 = scalar_select %p296, %s20, 1
        %s298 = smul.addr %s297, 8
        %s299 = scalar_lea.vmem %s7, %s298
        %p300 = scmp.lt.s32.totalorder %s20, 1
        %s301 = scalar_select %p300, %s20, 1
        %s302 = smul.addr %s301, 4
        %s303 = scalar_lea.vmem %s0, %s302
        %p304 = scmp.lt.s32.totalorder %s20, 1
        %s305 = scalar_select %p304, %s20, 1
        %s306 = smul.addr %s305, 8
        %s307 = scalar_lea.vmem %s7, %s306
        %v309 = vld [vmem:[%s303] sm:$0xf]
        %v310 = vld [vmem:[%s1] sm:$0xf]
        %v311 = vld [vmem:[%s1 + $0x4] sm:$0xf]
        %v312 = vld [vmem:[%s2] sm:$0x1]
        %v314 = vperm.slane %v312, 0
        %v318 = vunpack.c.l.b16 %v310
        %v319 = vunpack.c.l.b16 %v311
        %v320 = vpack.c.b16 %v319, %v318
        %vm322 = vcmask 130048
        %v324 = vsel %vm322, %v309, 0
        %326 = vmatpush.bf16.msra.mxu0 0
        %327 = vmatpush.bf16.msra.mxu0 0
        %328 = vmatpush.bf16.msra.mxu0 0
        %329 = vmatpush.bf16.msra.mxu0 0
        %330 = vmatpush.bf16.msra.mxu0 0
        %331 = vmatpush.bf16.msra.mxu0 0
        %332 = vmatpush.bf16.msra.mxu0 0
        %333 = vmatpush.bf16.msra.mxu0 %v320
        %334 = vmatmul.bf16.gmra.mxu0 %v324
        %v335 = vpop.f32.mrf.mxu0
        %v336 = vadd.f32 %v314, %v335
        %v337 = vpop.f32.mrf.mxu0
        %338 = vdwg.mxu0
        %v339 = vmax.f32 %v336, 0.0
        %v340 = vpack.c.bf16 %v339, %v339
        %v341 = vld [vmem:[#allocation2] sm:$0xf]
        %v342 = vld [vmem:[#allocation2 + $0x4] sm:$0xf]
        %v343 = vld [vmem:[#allocation2 + $0x8] sm:$0xf]
        %v344 = vld [vmem:[#allocation2 + $0xc] sm:$0xf]
        %v345 = vld [vmem:[#allocation2 + $0x10] sm:$0xf]
        %v346 = vld [vmem:[#allocation2 + $0x14] sm:$0xf]
        %v347 = vld [vmem:[#allocation2 + $0x18] sm:$0xf]
        %v348 = vld [vmem:[#allocation2 + $0x1c] sm:$0xf]
        %v349 = vld [vmem:[#allocation2 + $0x20] sm:$0xf]
        %v350 = vld [vmem:[#allocation2 + $0x24] sm:$0xf]
        %v351 = vld [vmem:[#allocation2 + $0x28] sm:$0xf]
        %v352 = vld [vmem:[#allocation2 + $0x2c] sm:$0xf]
        %v353 = vld [vmem:[#allocation2 + $0x30] sm:$0xf]
        %v354 = vld [vmem:[#allocation2 + $0x34] sm:$0xf]
        %v355 = vld [vmem:[#allocation2 + $0x38] sm:$0xf]
        %v356 = vld [vmem:[#allocation2 + $0x3c] sm:$0xf]
        %v357 = vld [vmem:[%s4] sm:$0x1]
        %v359 = vperm.slane %v357, 0
        %v377 = vunpack.c.l.b16 %v341
        %v378 = vunpack.c.l.b16 %v342
        %v379 = vunpack.c.l.b16 %v343
        %v380 = vunpack.c.l.b16 %v344
        %v381 = vunpack.c.l.b16 %v345
        %v382 = vunpack.c.l.b16 %v346
        %v383 = vunpack.c.l.b16 %v347
        %v384 = vunpack.c.l.b16 %v348
        %v385 = vunpack.c.l.b16 %v349
        %v386 = vunpack.c.l.b16 %v350
        %v387 = vunpack.c.l.b16 %v351
        %v388 = vunpack.c.l.b16 %v352
        %v389 = vunpack.c.l.b16 %v353
        %v390 = vunpack.c.l.b16 %v354
        %v391 = vunpack.c.l.b16 %v355
        %v392 = vunpack.c.l.b16 %v356
        %v393 = vpack.c.b16 %v378, %v377
        %v394 = vpack.c.b16 %v380, %v379
        %v395 = vpack.c.b16 %v382, %v381
        %v396 = vpack.c.b16 %v384, %v383
        %v397 = vpack.c.b16 %v386, %v385
        %v398 = vpack.c.b16 %v388, %v387
        %v399 = vpack.c.b16 %v390, %v389
        %v400 = vpack.c.b16 %v392, %v391
        %409 = vmatpush.bf16.msra.mxu0 %v400
        %410 = vmatpush.bf16.msra.mxu0 %v399
        %411 = vmatpush.bf16.msra.mxu0 %v398
        %412 = vmatpush.bf16.msra.mxu0 %v397
        %413 = vmatpush.bf16.msra.mxu0 %v396
        %414 = vmatpush.bf16.msra.mxu0 %v395
        %415 = vmatpush.bf16.msra.mxu0 %v394
        %416 = vmatpush.bf16.msra.mxu0 %v393
        %417 = vmatmul.bf16.gmra.mxu0 %v340
        %v418 = vpop.f32.mrf.mxu0
        %v419 = vadd.f32 %v359, %v418
        %v420 = vpop.f32.mrf.mxu0
        %421 = vdwg.mxu0
        %v422 = vmax.f32 %v419, 0.0
        %v423 = vpack.c.bf16 %v422, %v422
        %v424 = vld [vmem:[#allocation4] sm:$0xf]
        %v425 = vld [vmem:[#allocation4 + $0x4] sm:$0xf]
        %v426 = vld [vmem:[#allocation4 + $0x8] sm:$0xf]
        %v427 = vld [vmem:[#allocation4 + $0xc] sm:$0xf]
        %v428 = vld [vmem:[#allocation4 + $0x10] sm:$0xf]
        %v429 = vld [vmem:[#allocation4 + $0x14] sm:$0xf]
        %v430 = vld [vmem:[#allocation4 + $0x18] sm:$0xf]
        %v431 = vld [vmem:[#allocation4 + $0x1c] sm:$0xf]
        %v432 = vld [vmem:[#allocation4 + $0x20] sm:$0xf]
        %v433 = vld [vmem:[#allocation4 + $0x24] sm:$0xf]
        %v434 = vld [vmem:[#allocation4 + $0x28] sm:$0xf]
        %v435 = vld [vmem:[#allocation4 + $0x2c] sm:$0xf]
        %v436 = vld [vmem:[#allocation4 + $0x30] sm:$0xf]
        %v437 = vld [vmem:[#allocation4 + $0x34] sm:$0xf]
        %v438 = vld [vmem:[#allocation4 + $0x38] sm:$0xf]
        %v439 = vld [vmem:[#allocation4 + $0x3c] sm:$0xf]
        %v440 = vld [vmem:[%s6] sm:$0x1]
        %v442 = vperm.slane %v440, 0
        %v460 = vunpack.c.l.b16 %v424
        %v461 = vunpack.c.l.b16 %v425
        %v462 = vunpack.c.l.b16 %v426
        %v463 = vunpack.c.l.b16 %v427
        %v464 = vunpack.c.l.b16 %v428
        %v465 = vunpack.c.l.b16 %v429
        %v466 = vunpack.c.l.b16 %v430
        %v467 = vunpack.c.l.b16 %v431
        %v468 = vunpack.c.l.b16 %v432
        %v469 = vunpack.c.l.b16 %v433
        %v470 = vunpack.c.l.b16 %v434
        %v471 = vunpack.c.l.b16 %v435
        %v472 = vunpack.c.l.b16 %v436
        %v473 = vunpack.c.l.b16 %v437
        %v474 = vunpack.c.l.b16 %v438
        %v475 = vunpack.c.l.b16 %v439
        %v476 = vpack.c.b16 %v461, %v460
        %v477 = vpack.c.b16 %v463, %v462
        %v478 = vpack.c.b16 %v465, %v464
        %v479 = vpack.c.b16 %v467, %v466
        %v480 = vpack.c.b16 %v469, %v468
        %v481 = vpack.c.b16 %v471, %v470
        %v482 = vpack.c.b16 %v473, %v472
        %v483 = vpack.c.b16 %v475, %v474
        %492 = vmatpush.bf16.msra.mxu0 %v483
        %493 = vmatpush.bf16.msra.mxu0 %v482
        %494 = vmatpush.bf16.msra.mxu0 %v481
        %495 = vmatpush.bf16.msra.mxu0 %v480
        %496 = vmatpush.bf16.msra.mxu0 %v479
        %497 = vmatpush.bf16.msra.mxu0 %v478
        %498 = vmatpush.bf16.msra.mxu0 %v477
        %499 = vmatpush.bf16.msra.mxu0 %v476
        %500 = vmatmul.bf16.gmra.mxu0 %v423
        %v501 = vpop.f32.mrf.mxu0
        %v502 = vadd.f32 %v442, %v501
        %v503 = vpop.f32.mrf.mxu0
        %504 = vdwg.mxu0
        %505 = vst [vmem:[%s307] sm:$0xff] %v502
        %p506 = scmp.lt.s32.totalorder %s20, 1
        %s507 = scalar_select %p506, %s20, 1
        %s508 = smul.addr %s507, 8
        %s509 = scalar_lea.vmem %s7, %s508
        // Predicated region
        $region57: #{decoder_forward.1} parent=47 // pred_check
          %p510 = pneg %p190
        $region58: #{decoder_forward.1} parent=47 // pred_check_branch
          %512 = sbr.rel (%p510) target = $region60
        $region59: #{decoder_forward.1} parent=47 // pred_region
          _
        $region60: #{decoder_forward.1} parent=47 // pred_fallthru
          _
      $region48: #{decoder_forward.1} parent=5 // pred_fallthru
        _
      %p513 = scmp.le.s32.totalorder 2, %s15
      // Predicated region
      $region61: #{decoder_forward.1} parent=5 // pred_check
        %p514 = pneg %p513
      $region62: #{decoder_forward.1} parent=5 // pred_check_branch
        %516 = sbr.rel (%p514) target = $region64
      $region63: #{decoder_forward.1} parent=5 // pred_region
        %s517 = ssub.s32 %s15, 2
        // Predicated region
        $region65: #{decoder_forward.1} parent=63 // pred_check
          %p518 = pneg %p196
        $region66: #{decoder_forward.1} parent=63 // pred_check_branch
          %520 = sbr.rel (%p518) target = $region68
        $region67: #{decoder_forward.1} parent=63 // pred_region
          %p521 = scmp.lt.s32.totalorder %s21, 1
          %s522 = scalar_select %p521, %s21, 1
          %s523 = smul.addr %s522, 8
          %s524 = scalar_lea.vmem %s7, %s523
        $region68: #{decoder_forward.1} parent=63 // pred_fallthru
          _
      $region64: #{decoder_forward.1} parent=5 // pred_fallthru
        _
    $region6: #{decoder_forward.1} parent=1 // loop_footer
      %s19 = sadd.s32 1, %s15
    $region7: #{decoder_forward.1} parent=1 // loop_footer_branch
      %14 = sbr.rel target = $region3
    $region8: #{decoder_forward.1} parent=1 // loop_exit
      _
    %525 = vsyncpa [#allocation3], 1
    %s526 = scalar_lea.sflag [#allocation3], 1
    %527 = vsyncpa %s526, 1
    %528 = vsyncpa [#allocation5], 1

</llo_original>
